<compile_context>
chip_gen: v7x
topology: tpu7x:2x2x1
jax: 0.10.0
libtpu: 0.0.40
codegen_flags: <defaults>
</compile_context>

<pallas_src>
import functools
import math

import jax
import jax.numpy as jnp
from jax import lax
from jax.experimental import pallas as pl
from jax.experimental.pallas import tpu as pltpu


def _round_up(x, m):
    return ((x + m - 1) // m) * m


def _clamp_vmem(pipeline_bytes):
    # Budget = live pipeline buffers + headroom for Mosaic internal scratch.
    # TODO(synk): could be refined per-generation via pltpu.get_tpu_info().
    return int(min(max(2 * pipeline_bytes + (8 << 20), 32 << 20), 100 << 20))


# ---------------------------------------------------------------------------
# Kernel 1: fused QKV projection.
#   grid = (row_blocks, 3);  step j computes x_rows @ W_j^T  (j -> Q, K, V).
#   The x row-block has a constant index along j, so it stays resident.
# ---------------------------------------------------------------------------
def _qkv_proj_kernel(x_ref, w_ref, qkv_ref):
    qkv_ref[...] = lax.dot_general(
        x_ref[...], w_ref[...], (((1,), (0,)), ((), ())),
        preferred_element_type=jnp.float32).astype(qkv_ref.dtype)


# ---------------------------------------------------------------------------
# Kernel 2: flash attention over pre-projected Q/K/V tiles.
#   grid = (B, q_blocks, kv_blocks); online softmax in f32 VMEM scratch.
# ---------------------------------------------------------------------------
def _flash_attn_kernel(s_valid, tk, needs_mask, approx_recip,
                       q_ref, k_ref, v_ref, o_ref, m_sc, l_sc, acc_sc):
    ki = pl.program_id(2)

    @pl.when(ki == 0)
    def _init():
        m_sc[...] = jnp.full(m_sc.shape, -jnp.inf, dtype=jnp.float32)
        l_sc[...] = jnp.zeros(l_sc.shape, dtype=jnp.float32)
        acc_sc[...] = jnp.zeros(acc_sc.shape, dtype=jnp.float32)

    # Scores: contract embedding axes directly (no K transpose in VMEM).
    # The 1/sqrt(key_dim) scale is already folded into Wq (hence into Q).
    s = lax.dot_general(q_ref[...], k_ref[...], (((1,), (1,)), ((), ())),
                        preferred_element_type=jnp.float32)          # (TQ, TK)

    if needs_mask:  # compile-time flag: only emitted when S was padded
        kv_pos = ki * tk + lax.broadcasted_iota(jnp.int32, s.shape, 1)
        s = jnp.where(kv_pos < s_valid, s, -jnp.inf)

    # Online (flash) softmax update; statistics kept in f32.
    m_prev = m_sc[...]
    m_new = jnp.maximum(m_prev, jnp.max(s, axis=-1, keepdims=True))
    alpha = jnp.exp(m_prev - m_new)
    p = jnp.exp(s - m_new)
    l_sc[...] = alpha * l_sc[...] + jnp.sum(p, axis=-1, keepdims=True)
    acc_sc[...] = alpha * acc_sc[...] + lax.dot_general(
        p.astype(v_ref.dtype), v_ref[...], (((1,), (0,)), ((), ())),
        preferred_element_type=jnp.float32)
    m_sc[...] = m_new

    @pl.when(ki == pl.num_programs(2) - 1)
    def _finalize():
        if approx_recip:
            o_ref[...] = (acc_sc[...] *
                          pl.reciprocal(l_sc[...], approx=True)).astype(o_ref.dtype)
        else:
            o_ref[...] = (acc_sc[...] / l_sc[...]).astype(o_ref.dtype)


# ---------------------------------------------------------------------------
# Wrapper
# ---------------------------------------------------------------------------
def self_attention(x, w_query, w_key, w_value, *, tq=512, tk=512,
                   approx_reciprocal=False):
    """x: (B, S, D); weights: (D, D) in torch nn.Linear layout (out, in)."""
    B, S, D = x.shape
    out_dtype = x.dtype
    scale = 1.0 / math.sqrt(D)              # key_dim == embedding_dim == D

    # ---- lane-dense padding of the embedding dim (zero cols are exact) ----
    dp = _round_up(D, 128)

    def _pad_w(w):                          # (D, D) -> (dp, dp), zero padded
        return jnp.pad(w, ((0, dp - D), (0, dp - D)))

    # Fuse + pre-transpose the three projections; fold the softmax scale
    # into Wq so the kernel never multiplies by it.
    w_qkv = jnp.concatenate(
        [_pad_w((w_query * scale).T), _pad_w(w_key.T), _pad_w(w_value.T)],
        axis=1).astype(x.dtype)                                   # (dp, 3*dp)

    # ---- sequence tiling; ragged tail handled by padding + kv mask --------
    tq = max(8, min(_round_up(tq, 8), _round_up(S, 8)))
    tk = max(8, min(_round_up(tk, 8), _round_up(S, 8)))
    s_pad = _round_up(S, math.lcm(tq, tk))
    needs_mask = s_pad != S

    x_p = jnp.pad(x, ((0, 0), (0, s_pad - S), (0, dp - D)))
    itemsize = jnp.dtype(x_p.dtype).itemsize

    # ----------------------- QKV projection (once) -------------------------
    rows = B * s_pad
    tr = tq                                  # divides rows: s_pad % tq == 0
    x2d = x_p.reshape(rows, dp)

    proj_bytes = 2 * itemsize * (tr * dp + dp * dp + tr * dp)
    qkv = pl.pallas_call(
        _qkv_proj_kernel,
        out_shape=jax.ShapeDtypeStruct((rows, 3 * dp), x_p.dtype),
        grid_spec=pltpu.PrefetchScalarGridSpec(
            num_scalar_prefetch=0,
            grid=(rows // tr, 3),
            in_specs=[
                # x rows: constant index along j -> stays resident for Q/K/V
                pl.BlockSpec((tr, dp), lambda i, j: (i, 0)),
                # one (dp, dp) slice of the fused weight per j step
                pl.BlockSpec((dp, dp), lambda i, j: (0, j)),
            ],
            out_specs=pl.BlockSpec((tr, dp), lambda i, j: (i, j)),
        ),
        compiler_params=pltpu.CompilerParams(
            dimension_semantics=("parallel", "arbitrary"),
            vmem_limit_bytes=_clamp_vmem(proj_bytes),
        ),
    )(x2d, w_qkv)
    qkv = qkv.reshape(B, s_pad, 3 * dp)      # [..., 0:dp]=Q, [dp:2dp]=K, [2dp:]=V

    # --------------------------- flash attention ---------------------------
    grid = (B, s_pad // tq, s_pad // tk)
    flash_bytes = (2 * itemsize * (2 * tq * dp + 2 * tk * dp)    # q/out + k/v blocks (x2 buf)
                   + 4 * (tq * dp + 2 * tq))                     # f32 scratch

    kernel = functools.partial(_flash_attn_kernel, S, tk, needs_mask,
                               approx_reciprocal)

    out = pl.pallas_call(
        kernel,
        out_shape=jax.ShapeDtypeStruct((B, s_pad, dp), out_dtype),
        grid_spec=pltpu.PrefetchScalarGridSpec(
            num_scalar_prefetch=0,
            grid=grid,
            in_specs=[
                # Q tile of the current query block (resident across kv axis)
                pl.BlockSpec((pl.Squeezed(), tq, dp),
                             lambda b, qi, ki: (b, qi, 0)),
                # K tile of the current kv block (column block 1 of qkv)
                pl.BlockSpec((pl.Squeezed(), tk, dp),
                             lambda b, qi, ki: (b, ki, 1)),
                # V tile of the current kv block (column block 2 of qkv)
                pl.BlockSpec((pl.Squeezed(), tk, dp),
                             lambda b, qi, ki: (b, ki, 2)),
            ],
            out_specs=pl.BlockSpec((pl.Squeezed(), tq, dp),
                                   lambda b, qi, ki: (b, qi, 0)),
            scratch_shapes=[
                pltpu.VMEM((tq, 1), jnp.float32),    # running max  m
                pltpu.VMEM((tq, 1), jnp.float32),    # running sum  l
                pltpu.VMEM((tq, dp), jnp.float32),   # f32 output accumulator
            ],
        ),
        compiler_params=pltpu.CompilerParams(
            dimension_semantics=("parallel", "parallel", "arbitrary"),
            vmem_limit_bytes=_clamp_vmem(flash_bytes),
        ),
    )(qkv, qkv, qkv)

    return out[:, :S, :D]


# ---------------------------------------------------------------------------
# Self-test
# ---------------------------------------------------------------------------
def _reference(x, wq, wk, wv):
    q = jnp.einsum("bsd,ed->bse", x, wq)
    k = jnp.einsum("bsd,ed->bse", x, wk)
    v = jnp.einsum("bsd,ed->bse", x, wv)
    s = jnp.einsum("bqe,bke->bqk", q, k) / jnp.sqrt(jnp.float32(q.shape[-1]))
    p = jax.nn.softmax(s, axis=-1)
    return jnp.einsum("bqk,bkd->bqd", p, v)


if __name__ == "__main__":
    key = jax.random.PRNGKey(0)

    # First case matches the module's natural small shapes; second case
    # exercises the padding + kv-mask path (S and D not tile-aligned).
    for (B, S, D) in [(2, 8, 32), (1, 13, 20)]:
        key, kx, kq, kk, kv = jax.random.split(key, 5)
        x = jax.random.normal(kx, (B, S, D), dtype=jnp.float32)
        bound = 1.0 / math.sqrt(D)   # torch nn.Linear default init range
        w_query = jax.random.uniform(kq, (D, D), jnp.float32, -bound, bound)
        w_key = jax.random.uniform(kk, (D, D), jnp.float32, -bound, bound)
        w_value = jax.random.uniform(kv, (D, D), jnp.float32, -bound, bound)

        out = self_attention(x, w_query, w_key, w_value)
        jax.block_until_ready(out)

        ref = _reference(x, w_query, w_key, w_value)
        assert out.shape == (B, S, D)
        assert jnp.allclose(out, ref, atol=1e-4, rtol=1e-4), (B, S, D)

    print("KERNEL_OK")
</pallas_src>

<mosaic_0001>
module attributes {stable_mosaic.version = 11 : i64} {
  func.func @_qkv_proj_kernel(%arg0: i32, %arg1: i32, %arg2: memref<8x128xf32, #tpu.memory_space<vmem>>, %arg3: memref<128x128xf32, #tpu.memory_space<vmem>>, %arg4: memref<8x128xf32, #tpu.memory_space<vmem>>) attributes {dimension_semantics = [#tpu.dimension_semantics<parallel>, #tpu.dimension_semantics<arbitrary>], iteration_bounds = array<i64: 2, 3>, scalar_prefetch = 0 : i64, scratch_operands = 0 : i64, tpu.core_type = #tpu.core_type<tc>, window_params = [{transform_indices = @transform_0, window_bounds = array<i64: 8, 128>}, {transform_indices = @transform_1, window_bounds = array<i64: 128, 128>}, {transform_indices = @transform_2, window_bounds = array<i64: 8, 128>}]} {
    %c0 = arith.constant 0 : index
    %c0_0 = arith.constant 0 : index
    %0 = vector.load %arg2[%c0, %c0_0] : memref<8x128xf32, #tpu.memory_space<vmem>>, vector<8x128xf32>
    %c0_1 = arith.constant 0 : index
    %c0_2 = arith.constant 0 : index
    %1 = vector.load %arg3[%c0_1, %c0_2] : memref<128x128xf32, #tpu.memory_space<vmem>>, vector<128x128xf32>
    %cst = arith.constant dense<0.000000e+00> : vector<8x128xf32>
    %2 = tpu.matmul %0, %1, %cst {dimension_numbers = #tpu.dot_dimension_numbers<[1], [0], [0], [1], [0, 0, 1, 1], [], []>} : vector<8x128xf32>, vector<128x128xf32>, vector<8x128xf32> -> vector<8x128xf32>
    %c0_3 = arith.constant 0 : index
    %c0_4 = arith.constant 0 : index
    %3 = vector.load %arg4[%c0_3, %c0_4] : memref<8x128xf32, #tpu.memory_space<vmem>>, vector<8x128xf32>
    tpu.vector_store %arg4[%c0_3, %c0_4], %2 {strides = array<i32>} : memref<8x128xf32, #tpu.memory_space<vmem>>, vector<8x128xf32>,
    return
  }
  func.func @transform_0(%arg0: i32, %arg1: i32) -> (i32, i32) {
    %c0_i32 = arith.constant 0 : i32
    %c0_i32_0 = arith.constant 0 : i32
    return %arg0, %c0_i32 : i32, i32
  }
  func.func @transform_1(%arg0: i32, %arg1: i32) -> (i32, i32) {
    %c0_i32 = arith.constant 0 : i32
    %c0_i32_0 = arith.constant 0 : i32
    return %c0_i32, %arg1 : i32, i32
  }
  func.func @transform_2(%arg0: i32, %arg1: i32) -> (i32, i32) {
    %c0_i32 = arith.constant 0 : i32
    return %arg0, %arg1 : i32, i32
  }
}

</mosaic_0001>

<llo_original>
// kernel: tpu_custom_call.1
$region0: #{tpu_custom_call.1}
  #allocation0 [shape = 'u32[]', space=smem, size = 0x4, offset = 0x4, fixed_abs, tag = 'smem constant byte address 0x4 - core index']
  #allocation1 [shape = 'u32[144,128]{1,0:T(1,128)}', space=vmem, size = 0x12000, scoped, tag = 'internal scratch']
  %s0 = inlined_call_operand.hbm [shape: f32[16,128], index: 0, kind: input, shape index: {}]
  %s1 = inlined_call_operand.hbm [shape: f32[128,384], index: 1, kind: input, shape index: {}]
  %s2 = inlined_call_operand.hbm [shape: f32[16,384], index: 2, kind: output, shape index: {}]
  %s3 = sld [smem:[#allocation0]]
  $region49: #{tpu_custom_call.1} parent=0
    _
  %s5 = ssub.s32 1, %s3
  %s6 = scalar_select 0, %s5, %s3
  $region1: #{tpu_custom_call.1} parent=0
    #allocation2 [shape = 'u8[8192]{0}', space=vmem, size = 0x2000, scoped, tag = 'input window, operand 0']
    #allocation3 [shape = 's32[2]{0}', space=sflag, size = 0x8, scoped, tag = 'scoped memory for tpu_custom_call.1']
    #allocation4 [shape = 's32[2]{0}', space=sflag, size = 0x8, scoped, tag = 'scoped memory for tpu_custom_call.1']
    #allocation5 [shape = 'u8[131072]{0}', space=vmem, size = 0x20000, scoped, tag = 'input window, operand 1']
    #allocation6 [shape = 's32[2]{0}', space=sflag, size = 0x8, scoped, tag = 'scoped memory for tpu_custom_call.1']
    #allocation7 [shape = 'u8[8192]{0}', space=vmem, size = 0x2000, scoped, tag = 'output window, operand 0']
    %7 = vsyncpa [#allocation3], 0
    %s8 = scalar_lea.sflag [#allocation3], 1
    %9 = vsyncpa %s8, 0
    %10 = vsyncpa [#allocation6], 0
    %s11 = scalar_lea.sflag [#allocation6], 1
    %12 = vsyncpa %s11, 0
    %13 = vsyncpa [#allocation4], 0
    %s14 = scalar_lea.sflag [#allocation4], 1
    %15 = vsyncpa %s14, 0
    loop: start=0, step=1, limit=8
    $region2: #{tpu_custom_call.1} parent=1 // loop_pre_header
      _
    $region3: #{tpu_custom_call.1} parent=1 // loop_header
      %s17 = sphi 0, %s21
      %p18 = scmp.ge.s32.totalorder %s17, 8
      %s24 = sphi 0, %s36
      %s25 = sphi 0, %s32
      %s26 = sphi 0, %s24
      %s27 = sphi 0, %s25
      %s28 = sphi 0, %s26
      %s29 = sphi 0, %s27
      %s39 = sphi 0, %s41
      %s42 = sphi 0, %s39
      %s43 = sphi 0, %s42
      %s59 = sphi 0, %s43
      %s65 = sphi 0, %s67
      %s68 = sphi 0, %s65
      %s69 = sphi 0, %s68
      %s85 = sphi 0, %s69
      %s93 = sphi 0, %s95
      %s96 = sphi 0, %s93
      %s97 = sphi 0, %s96
      %s113 = sphi 0, %s97
    $region4: #{tpu_custom_call.1} parent=1 // loop_header_branch
      %20 = sbr.rel (%p18) target = $region8
    $region5: #{tpu_custom_call.1} parent=1 // loop_body
      %s22 = ssub.s32 %s17, 1
      %s23 = ssub.s32 %s17, 2
      %s30 = sadd.s32 1, %s25
      %p31 = scmp.ge.s32.totalorder %s30, 3
      %s32 = scalar_select %p31, 0, %s30
      %s33 = sadd.s32 1, %s24
      %s34 = scalar_select %p31, %s33, %s24
      %p35 = scmp.ge.s32.totalorder %s34, 2
      %s36 = scalar_select %p35, 0, %s34
      %s37 = ssub.s32 %s24, %s36
      %p38 = scmp.eq.s32.totalorder %s37, 0
      %s40 = sadd.s32 %s39, 1
      %s41 = scalar_select %p38, %s39, %s40
      %p44 = pneg %p38
      %p45 = scmp.eq.s32.totalorder %s17, 5
      %p46 = por %p44, %p45
      %p47 = scmp.ne.s32.totalorder %s39, %s42
      %p48 = scmp.eq.s32.totalorder %s17, 0
      %p49 = por %p47, %p48
      %p50 = scmp.ne.s32.totalorder %s39, %s42
      %p51 = scmp.eq.s32.totalorder %s22, 5
      %p52 = por %p50, %p51
      %p53 = scmp.ne.s32.totalorder %s42, %s43
      %p54 = scmp.eq.s32.totalorder %s22, 0
      %p55 = por %p53, %p54
      %p56 = scmp.ne.s32.totalorder %s42, %s43
      %p57 = scmp.eq.s32.totalorder %s23, 5
      %p58 = por %p56, %p57
      %p60 = scmp.ne.s32.totalorder %s43, %s59
      %p61 = scmp.eq.s32.totalorder %s23, 0
      %p62 = por %p60, %p61
      %s63 = ssub.s32 %s25, %s32
      %p64 = scmp.eq.s32.totalorder %s63, 0
      %s66 = sadd.s32 %s65, 1
      %s67 = scalar_select %p64, %s65, %s66
      %p70 = pneg %p64
      %p71 = scmp.eq.s32.totalorder %s17, 5
      %p72 = por %p70, %p71
      %p73 = scmp.ne.s32.totalorder %s65, %s68
      %p74 = scmp.eq.s32.totalorder %s17, 0
      %p75 = por %p73, %p74
      %p76 = scmp.ne.s32.totalorder %s65, %s68
      %p77 = scmp.eq.s32.totalorder %s22, 5
      %p78 = por %p76, %p77
      %p79 = scmp.ne.s32.totalorder %s68, %s69
      %p80 = scmp.eq.s32.totalorder %s22, 0
      %p81 = por %p79, %p80
      %p82 = scmp.ne.s32.totalorder %s68, %s69
      %p83 = scmp.eq.s32.totalorder %s23, 5
      %p84 = por %p82, %p83
      %p86 = scmp.ne.s32.totalorder %s69, %s85
      %p87 = scmp.eq.s32.totalorder %s23, 0
      %p88 = por %p86, %p87
      %s89 = ssub.s32 %s24, %s36
      %s90 = ssub.s32 %s25, %s32
      %s91 = sor.u32 %s89, %s90
      %p92 = scmp.eq.s32.totalorder %s91, 0
      %s94 = sadd.s32 %s93, 1
      %s95 = scalar_select %p92, %s93, %s94
      %p98 = pneg %p92
      %p99 = scmp.eq.s32.totalorder %s17, 5
      %p100 = por %p98, %p99
      %p101 = scmp.ne.s32.totalorder %s93, %s96
      %p102 = scmp.eq.s32.totalorder %s17, 0
      %p103 = por %p101, %p102
      %p104 = scmp.ne.s32.totalorder %s93, %s96
      %p105 = scmp.eq.s32.totalorder %s22, 5
      %p106 = por %p104, %p105
      %p107 = scmp.ne.s32.totalorder %s96, %s97
      %p108 = scmp.eq.s32.totalorder %s22, 0
      %p109 = por %p107, %p108
      %p110 = scmp.ne.s32.totalorder %s96, %s97
      %p111 = scmp.eq.s32.totalorder %s23, 5
      %p112 = por %p110, %p111
      %p114 = scmp.ne.s32.totalorder %s97, %s113
      %p115 = scmp.eq.s32.totalorder %s23, 0
      %p116 = por %p114, %p115
      %p117 = scmp.le.s32.totalorder 1, %s17
      %p118 = scmp.lt.s32.totalorder %s17, 7
      %p119 = pnand %p117, %p118
      %p120 = pneg %p119
      // Predicated region
      $region9: #{tpu_custom_call.1} parent=5 // pred_check
        _
      $region10: #{tpu_custom_call.1} parent=5 // pred_check_branch
        %122 = sbr.rel (%p119) target = $region12
      $region11: #{tpu_custom_call.1} parent=5 // pred_region
        %s123 = ssub.s32 %s17, 1
      $region12: #{tpu_custom_call.1} parent=5 // pred_fallthru
        _
      %p124 = scmp.lt.s32.totalorder %s17, 6
      // Predicated region
      $region13: #{tpu_custom_call.1} parent=5 // pred_check
        %p125 = pneg %p124
      $region14: #{tpu_custom_call.1} parent=5 // pred_check_branch
        %127 = sbr.rel (%p125) target = $region16
      $region15: #{tpu_custom_call.1} parent=5 // pred_region
        // Predicated region
        $region17: #{tpu_custom_call.1} parent=15 // pred_check
          %p128 = pneg %p49
        $region18: #{tpu_custom_call.1} parent=15 // pred_check_branch
          %130 = sbr.rel (%p128) target = $region20
        $region19: #{tpu_custom_call.1} parent=15 // pred_region
          %s131 = sand.u32 %s39, 1
          %s132 = scalar_lea.sflag [#allocation3], %s131
          %s133 = sand.u32 %s39, 1
          %s134 = smul.addr %s133, 8
          %s135 = scalar_lea.vmem [#allocation2], %s134
          %s137 = ssub.s32 128, 128
          %138 = vsyncadd %s132, %s137
          %s139 = smul.addr %s24, 128
          %s140 = scalar_lea.hbm %s0, %s139
          %s142 = sshll.u32 %s135, 4
          %s143 = int_to_ptr.vmem [resolvable:$true] %s142
          %145 = dma.hbm_to_vmem [thread:$0]  %s140, 128, %s143, %s132
        $region20: #{tpu_custom_call.1} parent=15 // pred_fallthru
          _
        // Predicated region
        $region21: #{tpu_custom_call.1} parent=15 // pred_check
          %p146 = pneg %p75
        $region22: #{tpu_custom_call.1} parent=15 // pred_check_branch
          %148 = sbr.rel (%p146) target = $region24
        $region23: #{tpu_custom_call.1} parent=15 // pred_region
          %s149 = sand.u32 %s65, 1
          %s150 = scalar_lea.sflag [#allocation6], %s149
          %s151 = sand.u32 %s65, 1
          %s152 = smul.addr %s151, 128
          %s153 = scalar_lea.vmem [#allocation5], %s152
          %s155 = ssub.s32 2048, 2048
          %156 = vsyncadd %s150, %s155
          %s157 = smul.addr %s25, 128
          %s158 = scalar_lea.hbm %s1, %s157
          %s159 = sshll.u32 %s153, 4
          %s160 = int_to_ptr.vmem [resolvable:$true] %s159
          %165 = dma.hbm_to_vmem [thread:$0]  %s158, 2048, %s160, %s150, 384, 128, 8
        $region24: #{tpu_custom_call.1} parent=15 // pred_fallthru
          _
      $region16: #{tpu_custom_call.1} parent=5 // pred_fallthru
        _
      %p166 = scmp.le.s32.totalorder 1, %s17
      %p167 = scmp.lt.s32.totalorder %s17, 7
      %p168 = pnand %p166, %p167
      %p169 = pneg %p168
      // Predicated region
      $region25: #{tpu_custom_call.1} parent=5 // pred_check
        _
      $region26: #{tpu_custom_call.1} parent=5 // pred_check_branch
        %171 = sbr.rel (%p168) target = $region28
      $region27: #{tpu_custom_call.1} parent=5 // pred_region
        %s172 = ssub.s32 %s17, 1
        %s173 = sand.u32 %s42, 1
        %s174 = scalar_lea.sflag [#allocation3], %s173
        %s175 = sand.u32 %s42, 1
        %s176 = smul.addr %s175, 8
        %s177 = scalar_lea.vmem [#allocation2], %s176
        // Predicated region
        $region29: #{tpu_custom_call.1} parent=27 // pred_check
          %p178 = pneg %p55
        $region30: #{tpu_custom_call.1} parent=27 // pred_check_branch
          %180 = sbr.rel (%p178) target = $region32
        $region31: #{tpu_custom_call.1} parent=27 // pred_region
          %181 = dma.done %s174, 128
        $region32: #{tpu_custom_call.1} parent=27 // pred_fallthru
          _
        %s182 = sand.u32 %s68, 1
        %s183 = scalar_lea.sflag [#allocation6], %s182
        %s184 = sand.u32 %s68, 1
        %s185 = smul.addr %s184, 128
        %s186 = scalar_lea.vmem [#allocation5], %s185
        // Predicated region
        $region33: #{tpu_custom_call.1} parent=27 // pred_check
          %p187 = pneg %p81
        $region34: #{tpu_custom_call.1} parent=27 // pred_check_branch
          %189 = sbr.rel (%p187) target = $region36
        $region35: #{tpu_custom_call.1} parent=27 // pred_region
          %190 = dma.done %s183, 2048
        $region36: #{tpu_custom_call.1} parent=27 // pred_fallthru
          _
        %s191 = sand.u32 %s42, 1
        %s192 = scalar_lea.sflag [#allocation3], %s191
        %s193 = sand.u32 %s42, 1
        %s194 = smul.addr %s193, 8
        %s195 = scalar_lea.vmem [#allocation2], %s194
        %p196 = pneg %p55
        %p197 = pneg %p52
        %s198 = sand.u32 %s68, 1
        %s199 = scalar_lea.sflag [#allocation6], %s198
        %s200 = sand.u32 %s68, 1
        %s201 = smul.addr %s200, 128
        %s202 = scalar_lea.vmem [#allocation5], %s201
        %p203 = pneg %p81
        %p204 = pneg %p78
        %p205 = pneg %p109
        %p206 = pneg %p106
        %s207 = sand.u32 %s96, 1
        %s208 = scalar_lea.sflag [#allocation4], %s207
        %s209 = sand.u32 %s96, 1
        %s210 = smul.addr %s209, 8
        %s211 = scalar_lea.vmem [#allocation7], %s210
        %v212 = vld [vmem:[%s177] sm:$0xff]
        %v213 = vld [vmem:[%s186] sm:$0xff]
        %v214 = vld [vmem:[%s186 + $0x8] sm:$0xff]
        %v215 = vld [vmem:[%s186 + $0x10] sm:$0xff]
        %v216 = vld [vmem:[%s186 + $0x18] sm:$0xff]
        %v217 = vld [vmem:[%s186 + $0x20] sm:$0xff]
        %v218 = vld [vmem:[%s186 + $0x28] sm:$0xff]
        %v219 = vld [vmem:[%s186 + $0x30] sm:$0xff]
        %v220 = vld [vmem:[%s186 + $0x38] sm:$0xff]
        %v221 = vld [vmem:[%s186 + $0x40] sm:$0xff]
        %v222 = vld [vmem:[%s186 + $0x48] sm:$0xff]
        %v223 = vld [vmem:[%s186 + $0x50] sm:$0xff]
        %v224 = vld [vmem:[%s186 + $0x58] sm:$0xff]
        %v225 = vld [vmem:[%s186 + $0x60] sm:$0xff]
        %v226 = vld [vmem:[%s186 + $0x68] sm:$0xff]
        %v227 = vld [vmem:[%s186 + $0x70] sm:$0xff]
        %v228 = vld [vmem:[%s186 + $0x78] sm:$0xff]
        %229 = vmatprep.subr.mxu0 0.0
        %230 = vmatpush1.msra.mxu0 %v213
        %231 = vmatprep.subr.mxu0 0.0
        %232 = vmatpush1.msra.mxu0 %v214
        %233 = vmatprep.subr.mxu0 0.0
        %234 = vmatpush1.msra.mxu0 %v215
        %235 = vmatprep.subr.mxu0 0.0
        %236 = vmatpush1.msra.mxu0 %v216
        %237 = vmatprep.subr.mxu0 0.0
        %238 = vmatpush1.msra.mxu0 %v217
        %239 = vmatprep.subr.mxu0 0.0
        %240 = vmatpush1.msra.mxu0 %v218
        %241 = vmatprep.subr.mxu0 0.0
        %242 = vmatpush1.msra.mxu0 %v219
        %243 = vmatprep.subr.mxu0 0.0
        %244 = vmatpush1.msra.mxu0 %v220
        %245 = vmatprep.subr.mxu0 0.0
        %246 = vmatpush1.msra.mxu0 %v221
        %247 = vmatprep.subr.mxu0 0.0
        %248 = vmatpush1.msra.mxu0 %v222
        %249 = vmatprep.subr.mxu0 0.0
        %250 = vmatpush1.msra.mxu0 %v223
        %251 = vmatprep.subr.mxu0 0.0
        %252 = vmatpush1.msra.mxu0 %v224
        %253 = vmatprep.subr.mxu0 0.0
        %254 = vmatpush1.msra.mxu0 %v225
        %255 = vmatprep.subr.mxu0 0.0
        %256 = vmatpush1.msra.mxu0 %v226
        %257 = vmatprep.subr.mxu0 0.0
        %258 = vmatpush1.msra.mxu0 %v227
        %259 = vmatprep.subr.mxu0 0.0
        %260 = vmatpush1.msra.mxu0 %v228
        %261 = vmatprep.subr.mxu0 0.0
        %262 = vmatpush1.msra.mxu0 0.0
        %263 = vmatprep.subr.mxu0 0.0
        %264 = vmatpush1.msra.mxu0 0.0
        %265 = vmatprep.subr.mxu0 0.0
        %266 = vmatpush1.msra.mxu0 0.0
        %267 = vmatprep.subr.mxu0 0.0
        %268 = vmatpush1.msra.mxu0 0.0
        %269 = vmatprep.subr.mxu0 0.0
        %270 = vmatpush1.msra.mxu0 0.0
        %271 = vmatprep.subr.mxu0 0.0
        %272 = vmatpush1.msra.mxu0 0.0
        %273 = vmatprep.subr.mxu0 0.0
        %274 = vmatpush1.msra.mxu0 0.0
        %275 = vmatprep.subr.mxu0 0.0
        %276 = vmatpush1.msra.mxu0 0.0
        %277 = vmatprep.subr.mxu0 0.0
        %278 = vmatpush1.msra.mxu0 0.0
        %279 = vmatprep.subr.mxu0 0.0
        %280 = vmatpush1.msra.mxu0 0.0
        %281 = vmatprep.subr.mxu0 0.0
        %282 = vmatpush1.msra.mxu0 0.0
        %283 = vmatprep.subr.mxu0 0.0
        %284 = vmatpush1.msra.mxu0 0.0
        %285 = vmatprep.subr.mxu0 0.0
        %286 = vmatpush1.msra.mxu0 0.0
        %287 = vmatprep.subr.mxu0 0.0
        %288 = vmatpush1.msra.mxu0 0.0
        %289 = vmatprep.subr.mxu0 0.0
        %290 = vmatpush1.msra.mxu0 0.0
        %291 = vmatprep.subr.mxu0 0.0
        %292 = vmatpush1.msra.mxu0 0.0
        %293 = vmatprep.mubr.f32.mxu0 0.0
        %294 = vmatmul.mubr.f32.gmra.mrb[0].mxu0 %v212
        %v295 = vpop.f32.mrb[0].mxu0
        %v296 = vadd.f32 0.0, %v295
        %v297 = vpop.f32.mrb[0].mxu0
        %298 = vdwg.mxu0
        %299 = vst [vmem:[%s211] sm:$0xff] %v296
        %s300 = sand.u32 %s96, 1
        %s301 = scalar_lea.sflag [#allocation4], %s300
        %s302 = sand.u32 %s96, 1
        %s303 = smul.addr %s302, 8
        %s304 = scalar_lea.vmem [#allocation7], %s303
        // Predicated region
        $region37: #{tpu_custom_call.1} parent=27 // pred_check
          %p305 = pneg %p106
        $region38: #{tpu_custom_call.1} parent=27 // pred_check_branch
          %307 = sbr.rel (%p305) target = $region40
        $region39: #{tpu_custom_call.1} parent=27 // pred_region
          %s309 = ssub.s32 128, 128
          %310 = vsyncadd %s301, %s309
          %s311 = smul.addr %s26, 3
          %s312 = sadd.s32 %s27, %s311
          %s313 = smul.addr %s312, 128
          %s314 = scalar_lea.hbm %s2, %s313
          %s316 = sshll.u32 %s304, 4
          %s317 = int_to_ptr.vmem [resolvable:$true] %s316
          %319 = dma.vmem_to_hbm [thread:$0]  %s317, 128, %s314, %s301
        $region40: #{tpu_custom_call.1} parent=27 // pred_fallthru
          _
      $region28: #{tpu_custom_call.1} parent=5 // pred_fallthru
        _
      %p320 = scmp.le.s32.totalorder 2, %s17
      // Predicated region
      $region41: #{tpu_custom_call.1} parent=5 // pred_check
        %p321 = pneg %p320
      $region42: #{tpu_custom_call.1} parent=5 // pred_check_branch
        %323 = sbr.rel (%p321) target = $region44
      $region43: #{tpu_custom_call.1} parent=5 // pred_region
        %s324 = ssub.s32 %s17, 2
        // Predicated region
        $region45: #{tpu_custom_call.1} parent=43 // pred_check
          %p325 = pneg %p112
        $region46: #{tpu_custom_call.1} parent=43 // pred_check_branch
          %327 = sbr.rel (%p325) target = $region48
        $region47: #{tpu_custom_call.1} parent=43 // pred_region
          %s328 = sand.u32 %s97, 1
          %s329 = scalar_lea.sflag [#allocation4], %s328
          %s330 = sand.u32 %s97, 1
          %s331 = smul.addr %s330, 8
          %s332 = scalar_lea.vmem [#allocation7], %s331
          %333 = dma.done %s329, 128
        $region48: #{tpu_custom_call.1} parent=43 // pred_fallthru
          _
      $region44: #{tpu_custom_call.1} parent=5 // pred_fallthru
        _
    $region6: #{tpu_custom_call.1} parent=1 // loop_footer
      %s21 = sadd.s32 1, %s17
    $region7: #{tpu_custom_call.1} parent=1 // loop_footer_branch
      %16 = sbr.rel target = $region3
    $region8: #{tpu_custom_call.1} parent=1 // loop_exit
      _
    %334 = vsyncpa [#allocation3], 1
    %s335 = scalar_lea.sflag [#allocation3], 1
    %336 = vsyncpa %s335, 1
    %337 = vsyncpa [#allocation6], 1
    %s338 = scalar_lea.sflag [#allocation6], 1
    %339 = vsyncpa %s338, 1
    %340 = vsyncpa [#allocation4], 1
    %s341 = scalar_lea.sflag [#allocation4], 1
    %342 = vsyncpa %s341, 1

</llo_original>
